<compile_context>
chip_gen: v7x
topology: tpu7x:2x2x1
jax: 0.10.0
libtpu: 0.0.40
codegen_flags: <defaults>
</compile_context>

<pallas_src>
import functools

import jax
import jax.numpy as jnp
from jax.experimental import pallas as pl
from jax.experimental.pallas import tpu as pltpu


def _vdn_row_sum_kernel(x_ref, o_ref, *, acc_dtype):
    # x_ref: (TM_ROWS, n) block in VMEM; o_ref: (TM_ROWS, 1) block in VMEM.
    # Single sublane/lane reduce on the XLU (idle slot in this DMA-bound loop),
    # accumulated in acc_dtype (f32 for float inputs, i32 for integer inputs).
    o_ref[...] = jnp.sum(
        x_ref[...].astype(acc_dtype), axis=-1, keepdims=True
    ).astype(o_ref.dtype)


def vdn_mixer(agent_qs, batch=None, use_cql=False, *, min_pallas_rows=512,
              block_rows=None):
    """JAX/Pallas equivalent of VDNMixer.forward.

    agent_qs: (..., n_agents) -> returns (..., 1), summing over the last axis.
    `batch` and `use_cql` are unused (kept for signature parity with PyTorch).
    `block_rows` optionally overrides the auto-sized row tile (testing / tuning).
    """
    orig_shape = agent_qs.shape
    n = orig_shape[-1]
    m = 1
    for d in orig_shape[:-1]:
        m *= d

    # Tiny inputs: XLA's fused row-reduce is already a single HBM pass and a
    # standalone custom call can't beat it once dispatch overhead is counted.
    if m < min_pallas_rows or m == 0 or n == 0:
        return jnp.sum(agent_qs, axis=-1, keepdims=True)

    # Free layout view: (..., n) -> (M, n) is a row-major reshape, no data movement.
    x2d = agent_qs.reshape(m, n)
    itemsize = jnp.dtype(agent_qs.dtype).itemsize

    # Accumulation dtype: f32 for float inputs; widen small ints to i32 so an
    # f32 round-trip never touches integer Q-values.
    if jnp.issubdtype(agent_qs.dtype, jnp.floating):
        acc_dtype = jnp.float32
    elif jnp.issubdtype(agent_qs.dtype, jnp.integer):
        acc_dtype = jnp.int32
    else:
        acc_dtype = agent_qs.dtype

    if block_rows is None:
        # Size the row tile from the PADDED VMEM footprint: last dim pads to a
        # multiple of 128 lanes for both the (TM, n) input and (TM, 1) output,
        # and both are double-buffered by the pipeline.
        lanes_in = ((n + 127) // 128) * 128
        lanes_out = 128
        bytes_per_row = 2 * (lanes_in + lanes_out) * itemsize  # in + out, 2 bufs each
        vmem_budget = 24 * 1024 * 1024  # headroom under the 32 MiB scoped request
        block_rows = vmem_budget // bytes_per_row
        block_rows = max(1024, min(block_rows, 32768))
    block_rows = max(8, (block_rows // 8) * 8)  # sublane multiple of 8

    if m <= block_rows:
        tm = m            # single full-extent block (exempt from (8,128) rule)
    else:
        tm = block_rows   # multiple of 8; ragged tail handled by masked writeback
    num_tiles = pl.cdiv(m, tm)

    cost = pl.CostEstimate(
        flops=m * max(n - 1, 0),
        transcendentals=0,
        bytes_accessed=m * n * itemsize + m * itemsize,
    )

    out2d = pl.pallas_call(
        functools.partial(_vdn_row_sum_kernel, acc_dtype=acc_dtype),
        out_shape=jax.ShapeDtypeStruct((m, 1), agent_qs.dtype),
        grid=(num_tiles,),
        # Input block (tm, n): contiguous HBM slab (block spans the full row
        # width), last dim == full extent so it is exempt from the 128 rule.
        in_specs=[pl.BlockSpec((tm, n), lambda i: (i, 0))],
        # Narrow (tm, 1) output: masked stores, but only ~1/n of input traffic.
        out_specs=pl.BlockSpec((tm, 1), lambda i: (i, 0)),
        compiler_params=pltpu.CompilerParams(
            # "parallel" lets the M axis shard across TCs where supported.
            # TODO(synk): if xprof on v7x shows one TensorCore idle, switch this
            # axis to pltpu.CORE_PARALLEL (or pl.core_map) for explicit 2-TC split.
            dimension_semantics=("parallel",),
            # Raise the scoped VMEM limit (v5e default is only 16 MiB); 32 MiB is
            # within physical VMEM on v5e/v6e (128 MiB) and v7x (64 MiB).
            vmem_limit_bytes=32 * 1024 * 1024,
        ),
        cost_estimate=cost,
    )(x2d)

    return out2d.reshape(orig_shape[:-1] + (1,))


if __name__ == "__main__":
    root = jax.random.PRNGKey(0)
    k0, k1, k2 = jax.random.split(root, 3)

    # Main example: (batch=4, seq=256, n_agents=8) -> M=1024 rows, exercises the
    # Pallas path with a single full-extent block.
    agent_qs = jax.random.normal(k0, (4, 256, 8), dtype=jnp.float32)
    out = jax.block_until_ready(vdn_mixer(agent_qs))
    ref = jnp.sum(agent_qs, axis=-1, keepdims=True)
    assert out.shape == (4, 256, 1), out.shape
    assert jnp.allclose(out, ref, atol=1e-5, rtol=1e-5), "mismatch vs reference (large)"

    # Tiny VDN shape: Pallas path forced on (min_pallas_rows=0) and default fallback.
    small = jax.random.normal(k1, (2, 8, 4), dtype=jnp.float32)
    ref_small = jnp.sum(small, axis=-1, keepdims=True)
    out_small_pallas = jax.block_until_ready(vdn_mixer(small, min_pallas_rows=0))
    assert out_small_pallas.shape == (2, 8, 1)
    assert jnp.allclose(out_small_pallas, ref_small, atol=1e-6), "mismatch (small, pallas)"
    out_small_fallback = jax.block_until_ready(vdn_mixer(small))  # jnp fallback
    assert jnp.allclose(out_small_fallback, ref_small, atol=1e-6), "mismatch (small, fallback)"

    # Ragged multi-tile check: M=210 rows with forced 64-row blocks exercises the
    # masked-writeback tail (no padding pass anywhere).
    ragged = jax.random.normal(k2, (3, 70, 5), dtype=jnp.float32)
    ref_ragged = jnp.sum(ragged, axis=-1, keepdims=True)
    out_ragged = jax.block_until_ready(
        vdn_mixer(ragged, min_pallas_rows=0, block_rows=64)
    )
    assert out_ragged.shape == (3, 70, 1)
    assert jnp.allclose(out_ragged, ref_ragged, atol=1e-5), "mismatch (ragged tail)"

    print("KERNEL_OK")
</pallas_src>

<mosaic_0001>
module attributes {stable_mosaic.version = 11 : i64} {
  func.func @_vdn_row_sum_kernel(%arg0: i32, %arg1: memref<1024x8xf32, #tpu.memory_space<vmem>>, %arg2: memref<1024x1xf32, #tpu.memory_space<vmem>>) attributes {dimension_semantics = [#tpu.dimension_semantics<parallel>], iteration_bounds = array<i64: 1>, scalar_prefetch = 0 : i64, scratch_operands = 0 : i64, tpu.core_type = #tpu.core_type<tc>, window_params = [{transform_indices = @transform_0, window_bounds = array<i64: 1024, 8>}, {transform_indices = @transform_1, window_bounds = array<i64: 1024, 1>}]} {
    %c0 = arith.constant 0 : index
    %c0_0 = arith.constant 0 : index
    %0 = vector.load %arg1[%c0, %c0_0] : memref<1024x8xf32, #tpu.memory_space<vmem>>, vector<1024x8xf32>
    %cst = arith.constant dense<0.000000e+00> : vector<1024xf32>
    %1 = vector.multi_reduction <add>, %0, %cst [1] : vector<1024x8xf32> to vector<1024xf32>
    %2 = vector.shape_cast %1 : vector<1024xf32> to vector<1024x1xf32>
    %c0_1 = arith.constant 0 : index
    %c0_2 = arith.constant 0 : index
    %3 = vector.load %arg2[%c0_1, %c0_2] : memref<1024x1xf32, #tpu.memory_space<vmem>>, vector<1024x1xf32>
    tpu.vector_store %arg2[%c0_1, %c0_2], %2 {strides = array<i32>} : memref<1024x1xf32, #tpu.memory_space<vmem>>, vector<1024x1xf32>,
    return
  }
  func.func @transform_0(%arg0: i32) -> (i32, i32) {
    %c0_i32 = arith.constant 0 : i32
    %c0_i32_0 = arith.constant 0 : i32
    return %arg0, %c0_i32 : i32, i32
  }
  func.func @transform_1(%arg0: i32) -> (i32, i32) {
    %c0_i32 = arith.constant 0 : i32
    %c0_i32_0 = arith.constant 0 : i32
    return %arg0, %c0_i32 : i32, i32
  }
}

</mosaic_0001>

<llo_original>
// kernel: tpu_custom_call.1
$region0: #{tpu_custom_call.1}
  #allocation0 [shape = 'u32[]', space=smem, size = 0x4, offset = 0x4, fixed_abs, tag = 'smem constant byte address 0x4 - core index']
  #allocation1 [shape = 'u32[144,128]{1,0:T(1,128)}', space=vmem, size = 0x12000, scoped, tag = 'internal scratch']
  %s0 = inlined_call_operand.vmem [shape: f32[1024,8], index: 0, kind: input, shape index: {}]
  %s1 = inlined_call_operand.vmem [shape: f32[1024,1], index: 1, kind: output, shape index: {}]
  %s2 = sld [smem:[#allocation0]]
  $region14: #{tpu_custom_call.1} parent=0
    _
  %s4 = ssub.s32 1, %s2
  %s5 = scalar_select 0, %s4, %s2
  // Predicated region
  $region2: #{tpu_custom_call.1} parent=0 // pred_check
    _
  $region3: #{tpu_custom_call.1} parent=0 // pred_check_branch
    %7 = sbr.rel (0) target = $region5
  $region4: #{tpu_custom_call.1} parent=0 // pred_region
    _
  $region5: #{tpu_custom_call.1} parent=0 // pred_fallthru
    _
  %v8 = vld [vmem:[%s0] sm:$0xff]
  %v9 = vld [vmem:[%s0 + $0x8] sm:$0xff]
  %v10 = vld [vmem:[%s0 + $0x10] sm:$0xff]
  %v11 = vld [vmem:[%s0 + $0x18] sm:$0xff]
  %v12 = vld [vmem:[%s0 + $0x20] sm:$0xff]
  %v13 = vld [vmem:[%s0 + $0x28] sm:$0xff]
  %v14 = vld [vmem:[%s0 + $0x30] sm:$0xff]
  %v15 = vld [vmem:[%s0 + $0x38] sm:$0xff]
  %v16 = vld [vmem:[%s0 + $0x40] sm:$0xff]
  %v17 = vld [vmem:[%s0 + $0x48] sm:$0xff]
  %v18 = vld [vmem:[%s0 + $0x50] sm:$0xff]
  %v19 = vld [vmem:[%s0 + $0x58] sm:$0xff]
  %v20 = vld [vmem:[%s0 + $0x60] sm:$0xff]
  %v21 = vld [vmem:[%s0 + $0x68] sm:$0xff]
  %v22 = vld [vmem:[%s0 + $0x70] sm:$0xff]
  %v23 = vld [vmem:[%s0 + $0x78] sm:$0xff]
  %v24 = vld [vmem:[%s0 + $0x80] sm:$0xff]
  %v25 = vld [vmem:[%s0 + $0x88] sm:$0xff]
  %v26 = vld [vmem:[%s0 + $0x90] sm:$0xff]
  %v27 = vld [vmem:[%s0 + $0x98] sm:$0xff]
  %v28 = vld [vmem:[%s0 + $0xa0] sm:$0xff]
  %v29 = vld [vmem:[%s0 + $0xa8] sm:$0xff]
  %v30 = vld [vmem:[%s0 + $0xb0] sm:$0xff]
  %v31 = vld [vmem:[%s0 + $0xb8] sm:$0xff]
  %v32 = vld [vmem:[%s0 + $0xc0] sm:$0xff]
  %v33 = vld [vmem:[%s0 + $0xc8] sm:$0xff]
  %v34 = vld [vmem:[%s0 + $0xd0] sm:$0xff]
  %v35 = vld [vmem:[%s0 + $0xd8] sm:$0xff]
  %v36 = vld [vmem:[%s0 + $0xe0] sm:$0xff]
  %v37 = vld [vmem:[%s0 + $0xe8] sm:$0xff]
  %v38 = vld [vmem:[%s0 + $0xf0] sm:$0xff]
  %v39 = vld [vmem:[%s0 + $0xf8] sm:$0xff]
  %v40 = vld [vmem:[%s0 + $0x100] sm:$0xff]
  %v41 = vld [vmem:[%s0 + $0x108] sm:$0xff]
  %v42 = vld [vmem:[%s0 + $0x110] sm:$0xff]
  %v43 = vld [vmem:[%s0 + $0x118] sm:$0xff]
  %v44 = vld [vmem:[%s0 + $0x120] sm:$0xff]
  %v45 = vld [vmem:[%s0 + $0x128] sm:$0xff]
  %v46 = vld [vmem:[%s0 + $0x130] sm:$0xff]
  %v47 = vld [vmem:[%s0 + $0x138] sm:$0xff]
  %v48 = vld [vmem:[%s0 + $0x140] sm:$0xff]
  %v49 = vld [vmem:[%s0 + $0x148] sm:$0xff]
  %v50 = vld [vmem:[%s0 + $0x150] sm:$0xff]
  %v51 = vld [vmem:[%s0 + $0x158] sm:$0xff]
  %v52 = vld [vmem:[%s0 + $0x160] sm:$0xff]
  %v53 = vld [vmem:[%s0 + $0x168] sm:$0xff]
  %v54 = vld [vmem:[%s0 + $0x170] sm:$0xff]
  %v55 = vld [vmem:[%s0 + $0x178] sm:$0xff]
  %v56 = vld [vmem:[%s0 + $0x180] sm:$0xff]
  %v57 = vld [vmem:[%s0 + $0x188] sm:$0xff]
  %v58 = vld [vmem:[%s0 + $0x190] sm:$0xff]
  %v59 = vld [vmem:[%s0 + $0x198] sm:$0xff]
  %v60 = vld [vmem:[%s0 + $0x1a0] sm:$0xff]
  %v61 = vld [vmem:[%s0 + $0x1a8] sm:$0xff]
  %v62 = vld [vmem:[%s0 + $0x1b0] sm:$0xff]
  %v63 = vld [vmem:[%s0 + $0x1b8] sm:$0xff]
  %v64 = vld [vmem:[%s0 + $0x1c0] sm:$0xff]
  %v65 = vld [vmem:[%s0 + $0x1c8] sm:$0xff]
  %v66 = vld [vmem:[%s0 + $0x1d0] sm:$0xff]
  %v67 = vld [vmem:[%s0 + $0x1d8] sm:$0xff]
  %v68 = vld [vmem:[%s0 + $0x1e0] sm:$0xff]
  %v69 = vld [vmem:[%s0 + $0x1e8] sm:$0xff]
  %v70 = vld [vmem:[%s0 + $0x1f0] sm:$0xff]
  %v71 = vld [vmem:[%s0 + $0x1f8] sm:$0xff]
  %v72 = vld [vmem:[%s0 + $0x200] sm:$0xff]
  %v73 = vld [vmem:[%s0 + $0x208] sm:$0xff]
  %v74 = vld [vmem:[%s0 + $0x210] sm:$0xff]
  %v75 = vld [vmem:[%s0 + $0x218] sm:$0xff]
  %v76 = vld [vmem:[%s0 + $0x220] sm:$0xff]
  %v77 = vld [vmem:[%s0 + $0x228] sm:$0xff]
  %v78 = vld [vmem:[%s0 + $0x230] sm:$0xff]
  %v79 = vld [vmem:[%s0 + $0x238] sm:$0xff]
  %v80 = vld [vmem:[%s0 + $0x240] sm:$0xff]
  %v81 = vld [vmem:[%s0 + $0x248] sm:$0xff]
  %v82 = vld [vmem:[%s0 + $0x250] sm:$0xff]
  %v83 = vld [vmem:[%s0 + $0x258] sm:$0xff]
  %v84 = vld [vmem:[%s0 + $0x260] sm:$0xff]
  %v85 = vld [vmem:[%s0 + $0x268] sm:$0xff]
  %v86 = vld [vmem:[%s0 + $0x270] sm:$0xff]
  %v87 = vld [vmem:[%s0 + $0x278] sm:$0xff]
  %v88 = vld [vmem:[%s0 + $0x280] sm:$0xff]
  %v89 = vld [vmem:[%s0 + $0x288] sm:$0xff]
  %v90 = vld [vmem:[%s0 + $0x290] sm:$0xff]
  %v91 = vld [vmem:[%s0 + $0x298] sm:$0xff]
  %v92 = vld [vmem:[%s0 + $0x2a0] sm:$0xff]
  %v93 = vld [vmem:[%s0 + $0x2a8] sm:$0xff]
  %v94 = vld [vmem:[%s0 + $0x2b0] sm:$0xff]
  %v95 = vld [vmem:[%s0 + $0x2b8] sm:$0xff]
  %v96 = vld [vmem:[%s0 + $0x2c0] sm:$0xff]
  %v97 = vld [vmem:[%s0 + $0x2c8] sm:$0xff]
  %v98 = vld [vmem:[%s0 + $0x2d0] sm:$0xff]
  %v99 = vld [vmem:[%s0 + $0x2d8] sm:$0xff]
  %v100 = vld [vmem:[%s0 + $0x2e0] sm:$0xff]
  %v101 = vld [vmem:[%s0 + $0x2e8] sm:$0xff]
  %v102 = vld [vmem:[%s0 + $0x2f0] sm:$0xff]
  %v103 = vld [vmem:[%s0 + $0x2f8] sm:$0xff]
  %v104 = vld [vmem:[%s0 + $0x300] sm:$0xff]
  %v105 = vld [vmem:[%s0 + $0x308] sm:$0xff]
  %v106 = vld [vmem:[%s0 + $0x310] sm:$0xff]
  %v107 = vld [vmem:[%s0 + $0x318] sm:$0xff]
  %v108 = vld [vmem:[%s0 + $0x320] sm:$0xff]
  %v109 = vld [vmem:[%s0 + $0x328] sm:$0xff]
  %v110 = vld [vmem:[%s0 + $0x330] sm:$0xff]
  %v111 = vld [vmem:[%s0 + $0x338] sm:$0xff]
  %v112 = vld [vmem:[%s0 + $0x340] sm:$0xff]
  %v113 = vld [vmem:[%s0 + $0x348] sm:$0xff]
  %v114 = vld [vmem:[%s0 + $0x350] sm:$0xff]
  %v115 = vld [vmem:[%s0 + $0x358] sm:$0xff]
  %v116 = vld [vmem:[%s0 + $0x360] sm:$0xff]
  %v117 = vld [vmem:[%s0 + $0x368] sm:$0xff]
  %v118 = vld [vmem:[%s0 + $0x370] sm:$0xff]
  %v119 = vld [vmem:[%s0 + $0x378] sm:$0xff]
  %v120 = vld [vmem:[%s0 + $0x380] sm:$0xff]
  %v121 = vld [vmem:[%s0 + $0x388] sm:$0xff]
  %v122 = vld [vmem:[%s0 + $0x390] sm:$0xff]
  %v123 = vld [vmem:[%s0 + $0x398] sm:$0xff]
  %v124 = vld [vmem:[%s0 + $0x3a0] sm:$0xff]
  %v125 = vld [vmem:[%s0 + $0x3a8] sm:$0xff]
  %v126 = vld [vmem:[%s0 + $0x3b0] sm:$0xff]
  %v127 = vld [vmem:[%s0 + $0x3b8] sm:$0xff]
  %v128 = vld [vmem:[%s0 + $0x3c0] sm:$0xff]
  %v129 = vld [vmem:[%s0 + $0x3c8] sm:$0xff]
  %v130 = vld [vmem:[%s0 + $0x3d0] sm:$0xff]
  %v131 = vld [vmem:[%s0 + $0x3d8] sm:$0xff]
  %v132 = vld [vmem:[%s0 + $0x3e0] sm:$0xff]
  %v133 = vld [vmem:[%s0 + $0x3e8] sm:$0xff]
  %v134 = vld [vmem:[%s0 + $0x3f0] sm:$0xff]
  %v135 = vld [vmem:[%s0 + $0x3f8] sm:$0xff]
  %vm136 = vcmask 64512
  %v137 = vsel %vm136, %v8, 0.0
  %138 = vadd.xlane.f32.xlu0 %v137
  %v139 = vpop.xlane.xlu0 %138
  %v140 = vsel %vm136, %v9, 0.0
  %141 = vadd.xlane.f32.xlu0 %v140
  %v142 = vpop.xlane.xlu0 %141
  %v143 = vsel %vm136, %v10, 0.0
  %144 = vadd.xlane.f32.xlu0 %v143
  %v145 = vpop.xlane.xlu0 %144
  %v146 = vsel %vm136, %v11, 0.0
  %147 = vadd.xlane.f32.xlu0 %v146
  %v148 = vpop.xlane.xlu0 %147
  %v149 = vsel %vm136, %v12, 0.0
  %150 = vadd.xlane.f32.xlu0 %v149
  %v151 = vpop.xlane.xlu0 %150
  %v152 = vsel %vm136, %v13, 0.0
  %153 = vadd.xlane.f32.xlu0 %v152
  %v154 = vpop.xlane.xlu0 %153
  %v155 = vsel %vm136, %v14, 0.0
  %156 = vadd.xlane.f32.xlu0 %v155
  %v157 = vpop.xlane.xlu0 %156
  %v158 = vsel %vm136, %v15, 0.0
  %159 = vadd.xlane.f32.xlu0 %v158
  %v160 = vpop.xlane.xlu0 %159
  %v161 = vsel %vm136, %v16, 0.0
  %162 = vadd.xlane.f32.xlu0 %v161
  %v163 = vpop.xlane.xlu0 %162
  %v164 = vsel %vm136, %v17, 0.0
  %165 = vadd.xlane.f32.xlu0 %v164
  %v166 = vpop.xlane.xlu0 %165
  %v167 = vsel %vm136, %v18, 0.0
  %168 = vadd.xlane.f32.xlu0 %v167
  %v169 = vpop.xlane.xlu0 %168
  %v170 = vsel %vm136, %v19, 0.0
  %171 = vadd.xlane.f32.xlu0 %v170
  %v172 = vpop.xlane.xlu0 %171
  %v173 = vsel %vm136, %v20, 0.0
  %174 = vadd.xlane.f32.xlu0 %v173
  %v175 = vpop.xlane.xlu0 %174
  %v176 = vsel %vm136, %v21, 0.0
  %177 = vadd.xlane.f32.xlu0 %v176
  %v178 = vpop.xlane.xlu0 %177
  %v179 = vsel %vm136, %v22, 0.0
  %180 = vadd.xlane.f32.xlu0 %v179
  %v181 = vpop.xlane.xlu0 %180
  %v182 = vsel %vm136, %v23, 0.0
  %183 = vadd.xlane.f32.xlu0 %v182
  %v184 = vpop.xlane.xlu0 %183
  %v185 = vsel %vm136, %v24, 0.0
  %186 = vadd.xlane.f32.xlu0 %v185
  %v187 = vpop.xlane.xlu0 %186
  %v188 = vsel %vm136, %v25, 0.0
  %189 = vadd.xlane.f32.xlu0 %v188
  %v190 = vpop.xlane.xlu0 %189
  %v191 = vsel %vm136, %v26, 0.0
  %192 = vadd.xlane.f32.xlu0 %v191
  %v193 = vpop.xlane.xlu0 %192
  %v194 = vsel %vm136, %v27, 0.0
  %195 = vadd.xlane.f32.xlu0 %v194
  %v196 = vpop.xlane.xlu0 %195
  %v197 = vsel %vm136, %v28, 0.0
  %198 = vadd.xlane.f32.xlu0 %v197
  %v199 = vpop.xlane.xlu0 %198
  %v200 = vsel %vm136, %v29, 0.0
  %201 = vadd.xlane.f32.xlu0 %v200
  %v202 = vpop.xlane.xlu0 %201
  %v203 = vsel %vm136, %v30, 0.0
  %204 = vadd.xlane.f32.xlu0 %v203
  %v205 = vpop.xlane.xlu0 %204
  %v206 = vsel %vm136, %v31, 0.0
  %207 = vadd.xlane.f32.xlu0 %v206
  %v208 = vpop.xlane.xlu0 %207
  %v209 = vsel %vm136, %v32, 0.0
  %210 = vadd.xlane.f32.xlu0 %v209
  %v211 = vpop.xlane.xlu0 %210
  %v212 = vsel %vm136, %v33, 0.0
  %213 = vadd.xlane.f32.xlu0 %v212
  %v214 = vpop.xlane.xlu0 %213
  %v215 = vsel %vm136, %v34, 0.0
  %216 = vadd.xlane.f32.xlu0 %v215
  %v217 = vpop.xlane.xlu0 %216
  %v218 = vsel %vm136, %v35, 0.0
  %219 = vadd.xlane.f32.xlu0 %v218
  %v220 = vpop.xlane.xlu0 %219
  %v221 = vsel %vm136, %v36, 0.0
  %222 = vadd.xlane.f32.xlu0 %v221
  %v223 = vpop.xlane.xlu0 %222
  %v224 = vsel %vm136, %v37, 0.0
  %225 = vadd.xlane.f32.xlu0 %v224
  %v226 = vpop.xlane.xlu0 %225
  %v227 = vsel %vm136, %v38, 0.0
  %228 = vadd.xlane.f32.xlu0 %v227
  %v229 = vpop.xlane.xlu0 %228
  %v230 = vsel %vm136, %v39, 0.0
  %231 = vadd.xlane.f32.xlu0 %v230
  %v232 = vpop.xlane.xlu0 %231
  %v233 = vsel %vm136, %v40, 0.0
  %234 = vadd.xlane.f32.xlu0 %v233
  %v235 = vpop.xlane.xlu0 %234
  %v236 = vsel %vm136, %v41, 0.0
  %237 = vadd.xlane.f32.xlu0 %v236
  %v238 = vpop.xlane.xlu0 %237
  %v239 = vsel %vm136, %v42, 0.0
  %240 = vadd.xlane.f32.xlu0 %v239
  %v241 = vpop.xlane.xlu0 %240
  %v242 = vsel %vm136, %v43, 0.0
  %243 = vadd.xlane.f32.xlu0 %v242
  %v244 = vpop.xlane.xlu0 %243
  %v245 = vsel %vm136, %v44, 0.0
  %246 = vadd.xlane.f32.xlu0 %v245
  %v247 = vpop.xlane.xlu0 %246
  %v248 = vsel %vm136, %v45, 0.0
  %249 = vadd.xlane.f32.xlu0 %v248
  %v250 = vpop.xlane.xlu0 %249
  %v251 = vsel %vm136, %v46, 0.0
  %252 = vadd.xlane.f32.xlu0 %v251
  %v253 = vpop.xlane.xlu0 %252
  %v254 = vsel %vm136, %v47, 0.0
  %255 = vadd.xlane.f32.xlu0 %v254
  %v256 = vpop.xlane.xlu0 %255
  %v257 = vsel %vm136, %v48, 0.0
  %258 = vadd.xlane.f32.xlu0 %v257
  %v259 = vpop.xlane.xlu0 %258
  %v260 = vsel %vm136, %v49, 0.0
  %261 = vadd.xlane.f32.xlu0 %v260
  %v262 = vpop.xlane.xlu0 %261
  %v263 = vsel %vm136, %v50, 0.0
  %264 = vadd.xlane.f32.xlu0 %v263
  %v265 = vpop.xlane.xlu0 %264
  %v266 = vsel %vm136, %v51, 0.0
  %267 = vadd.xlane.f32.xlu0 %v266
  %v268 = vpop.xlane.xlu0 %267
  %v269 = vsel %vm136, %v52, 0.0
  %270 = vadd.xlane.f32.xlu0 %v269
  %v271 = vpop.xlane.xlu0 %270
  %v272 = vsel %vm136, %v53, 0.0
  %273 = vadd.xlane.f32.xlu0 %v272
  %v274 = vpop.xlane.xlu0 %273
  %v275 = vsel %vm136, %v54, 0.0
  %276 = vadd.xlane.f32.xlu0 %v275
  %v277 = vpop.xlane.xlu0 %276
  %v278 = vsel %vm136, %v55, 0.0
  %279 = vadd.xlane.f32.xlu0 %v278
  %v280 = vpop.xlane.xlu0 %279
  %v281 = vsel %vm136, %v56, 0.0
  %282 = vadd.xlane.f32.xlu0 %v281
  %v283 = vpop.xlane.xlu0 %282
  %v284 = vsel %vm136, %v57, 0.0
  %285 = vadd.xlane.f32.xlu0 %v284
  %v286 = vpop.xlane.xlu0 %285
  %v287 = vsel %vm136, %v58, 0.0
  %288 = vadd.xlane.f32.xlu0 %v287
  %v289 = vpop.xlane.xlu0 %288
  %v290 = vsel %vm136, %v59, 0.0
  %291 = vadd.xlane.f32.xlu0 %v290
  %v292 = vpop.xlane.xlu0 %291
  %v293 = vsel %vm136, %v60, 0.0
  %294 = vadd.xlane.f32.xlu0 %v293
  %v295 = vpop.xlane.xlu0 %294
  %v296 = vsel %vm136, %v61, 0.0
  %297 = vadd.xlane.f32.xlu0 %v296
  %v298 = vpop.xlane.xlu0 %297
  %v299 = vsel %vm136, %v62, 0.0
  %300 = vadd.xlane.f32.xlu0 %v299
  %v301 = vpop.xlane.xlu0 %300
  %v302 = vsel %vm136, %v63, 0.0
  %303 = vadd.xlane.f32.xlu0 %v302
  %v304 = vpop.xlane.xlu0 %303
  %v305 = vsel %vm136, %v64, 0.0
  %306 = vadd.xlane.f32.xlu0 %v305
  %v307 = vpop.xlane.xlu0 %306
  %v308 = vsel %vm136, %v65, 0.0
  %309 = vadd.xlane.f32.xlu0 %v308
  %v310 = vpop.xlane.xlu0 %309
  %v311 = vsel %vm136, %v66, 0.0
  %312 = vadd.xlane.f32.xlu0 %v311
  %v313 = vpop.xlane.xlu0 %312
  %v314 = vsel %vm136, %v67, 0.0
  %315 = vadd.xlane.f32.xlu0 %v314
  %v316 = vpop.xlane.xlu0 %315
  %v317 = vsel %vm136, %v68, 0.0
  %318 = vadd.xlane.f32.xlu0 %v317
  %v319 = vpop.xlane.xlu0 %318
  %v320 = vsel %vm136, %v69, 0.0
  %321 = vadd.xlane.f32.xlu0 %v320
  %v322 = vpop.xlane.xlu0 %321
  %v323 = vsel %vm136, %v70, 0.0
  %324 = vadd.xlane.f32.xlu0 %v323
  %v325 = vpop.xlane.xlu0 %324
  %v326 = vsel %vm136, %v71, 0.0
  %327 = vadd.xlane.f32.xlu0 %v326
  %v328 = vpop.xlane.xlu0 %327
  %v329 = vsel %vm136, %v72, 0.0
  %330 = vadd.xlane.f32.xlu0 %v329
  %v331 = vpop.xlane.xlu0 %330
  %v332 = vsel %vm136, %v73, 0.0
  %333 = vadd.xlane.f32.xlu0 %v332
  %v334 = vpop.xlane.xlu0 %333
  %v335 = vsel %vm136, %v74, 0.0
  %336 = vadd.xlane.f32.xlu0 %v335
  %v337 = vpop.xlane.xlu0 %336
  %v338 = vsel %vm136, %v75, 0.0
  %339 = vadd.xlane.f32.xlu0 %v338
  %v340 = vpop.xlane.xlu0 %339
  %v341 = vsel %vm136, %v76, 0.0
  %342 = vadd.xlane.f32.xlu0 %v341
  %v343 = vpop.xlane.xlu0 %342
  %v344 = vsel %vm136, %v77, 0.0
  %345 = vadd.xlane.f32.xlu0 %v344
  %v346 = vpop.xlane.xlu0 %345
  %v347 = vsel %vm136, %v78, 0.0
  %348 = vadd.xlane.f32.xlu0 %v347
  %v349 = vpop.xlane.xlu0 %348
  %v350 = vsel %vm136, %v79, 0.0
  %351 = vadd.xlane.f32.xlu0 %v350
  %v352 = vpop.xlane.xlu0 %351
  %v353 = vsel %vm136, %v80, 0.0
  %354 = vadd.xlane.f32.xlu0 %v353
  %v355 = vpop.xlane.xlu0 %354
  %v356 = vsel %vm136, %v81, 0.0
  %357 = vadd.xlane.f32.xlu0 %v356
  %v358 = vpop.xlane.xlu0 %357
  %v359 = vsel %vm136, %v82, 0.0
  %360 = vadd.xlane.f32.xlu0 %v359
  %v361 = vpop.xlane.xlu0 %360
  %v362 = vsel %vm136, %v83, 0.0
  %363 = vadd.xlane.f32.xlu0 %v362
  %v364 = vpop.xlane.xlu0 %363
  %v365 = vsel %vm136, %v84, 0.0
  %366 = vadd.xlane.f32.xlu0 %v365
  %v367 = vpop.xlane.xlu0 %366
  %v368 = vsel %vm136, %v85, 0.0
  %369 = vadd.xlane.f32.xlu0 %v368
  %v370 = vpop.xlane.xlu0 %369
  %v371 = vsel %vm136, %v86, 0.0
  %372 = vadd.xlane.f32.xlu0 %v371
  %v373 = vpop.xlane.xlu0 %372
  %v374 = vsel %vm136, %v87, 0.0
  %375 = vadd.xlane.f32.xlu0 %v374
  %v376 = vpop.xlane.xlu0 %375
  %v377 = vsel %vm136, %v88, 0.0
  %378 = vadd.xlane.f32.xlu0 %v377
  %v379 = vpop.xlane.xlu0 %378
  %v380 = vsel %vm136, %v89, 0.0
  %381 = vadd.xlane.f32.xlu0 %v380
  %v382 = vpop.xlane.xlu0 %381
  %v383 = vsel %vm136, %v90, 0.0
  %384 = vadd.xlane.f32.xlu0 %v383
  %v385 = vpop.xlane.xlu0 %384
  %v386 = vsel %vm136, %v91, 0.0
  %387 = vadd.xlane.f32.xlu0 %v386
  %v388 = vpop.xlane.xlu0 %387
  %v389 = vsel %vm136, %v92, 0.0
  %390 = vadd.xlane.f32.xlu0 %v389
  %v391 = vpop.xlane.xlu0 %390
  %v392 = vsel %vm136, %v93, 0.0
  %393 = vadd.xlane.f32.xlu0 %v392
  %v394 = vpop.xlane.xlu0 %393
  %v395 = vsel %vm136, %v94, 0.0
  %396 = vadd.xlane.f32.xlu0 %v395
  %v397 = vpop.xlane.xlu0 %396
  %v398 = vsel %vm136, %v95, 0.0
  %399 = vadd.xlane.f32.xlu0 %v398
  %v400 = vpop.xlane.xlu0 %399
  %v401 = vsel %vm136, %v96, 0.0
  %402 = vadd.xlane.f32.xlu0 %v401
  %v403 = vpop.xlane.xlu0 %402
  %v404 = vsel %vm136, %v97, 0.0
  %405 = vadd.xlane.f32.xlu0 %v404
  %v406 = vpop.xlane.xlu0 %405
  %v407 = vsel %vm136, %v98, 0.0
  %408 = vadd.xlane.f32.xlu0 %v407
  %v409 = vpop.xlane.xlu0 %408
  %v410 = vsel %vm136, %v99, 0.0
  %411 = vadd.xlane.f32.xlu0 %v410
  %v412 = vpop.xlane.xlu0 %411
  %v413 = vsel %vm136, %v100, 0.0
  %414 = vadd.xlane.f32.xlu0 %v413
  %v415 = vpop.xlane.xlu0 %414
  %v416 = vsel %vm136, %v101, 0.0
  %417 = vadd.xlane.f32.xlu0 %v416
  %v418 = vpop.xlane.xlu0 %417
  %v419 = vsel %vm136, %v102, 0.0
  %420 = vadd.xlane.f32.xlu0 %v419
  %v421 = vpop.xlane.xlu0 %420
  %v422 = vsel %vm136, %v103, 0.0
  %423 = vadd.xlane.f32.xlu0 %v422
  %v424 = vpop.xlane.xlu0 %423
  %v425 = vsel %vm136, %v104, 0.0
  %426 = vadd.xlane.f32.xlu0 %v425
  %v427 = vpop.xlane.xlu0 %426
  %v428 = vsel %vm136, %v105, 0.0
  %429 = vadd.xlane.f32.xlu0 %v428
  %v430 = vpop.xlane.xlu0 %429
  %v431 = vsel %vm136, %v106, 0.0
  %432 = vadd.xlane.f32.xlu0 %v431
  %v433 = vpop.xlane.xlu0 %432
  %v434 = vsel %vm136, %v107, 0.0
  %435 = vadd.xlane.f32.xlu0 %v434
  %v436 = vpop.xlane.xlu0 %435
  %v437 = vsel %vm136, %v108, 0.0
  %438 = vadd.xlane.f32.xlu0 %v437
  %v439 = vpop.xlane.xlu0 %438
  %v440 = vsel %vm136, %v109, 0.0
  %441 = vadd.xlane.f32.xlu0 %v440
  %v442 = vpop.xlane.xlu0 %441
  %v443 = vsel %vm136, %v110, 0.0
  %444 = vadd.xlane.f32.xlu0 %v443
  %v445 = vpop.xlane.xlu0 %444
  %v446 = vsel %vm136, %v111, 0.0
  %447 = vadd.xlane.f32.xlu0 %v446
  %v448 = vpop.xlane.xlu0 %447
  %v449 = vsel %vm136, %v112, 0.0
  %450 = vadd.xlane.f32.xlu0 %v449
  %v451 = vpop.xlane.xlu0 %450
  %v452 = vsel %vm136, %v113, 0.0
  %453 = vadd.xlane.f32.xlu0 %v452
  %v454 = vpop.xlane.xlu0 %453
  %v455 = vsel %vm136, %v114, 0.0
  %456 = vadd.xlane.f32.xlu0 %v455
  %v457 = vpop.xlane.xlu0 %456
  %v458 = vsel %vm136, %v115, 0.0
  %459 = vadd.xlane.f32.xlu0 %v458
  %v460 = vpop.xlane.xlu0 %459
  %v461 = vsel %vm136, %v116, 0.0
  %462 = vadd.xlane.f32.xlu0 %v461
  %v463 = vpop.xlane.xlu0 %462
  %v464 = vsel %vm136, %v117, 0.0
  %465 = vadd.xlane.f32.xlu0 %v464
  %v466 = vpop.xlane.xlu0 %465
  %v467 = vsel %vm136, %v118, 0.0
  %468 = vadd.xlane.f32.xlu0 %v467
  %v469 = vpop.xlane.xlu0 %468
  %v470 = vsel %vm136, %v119, 0.0
  %471 = vadd.xlane.f32.xlu0 %v470
  %v472 = vpop.xlane.xlu0 %471
  %v473 = vsel %vm136, %v120, 0.0
  %474 = vadd.xlane.f32.xlu0 %v473
  %v475 = vpop.xlane.xlu0 %474
  %v476 = vsel %vm136, %v121, 0.0
  %477 = vadd.xlane.f32.xlu0 %v476
  %v478 = vpop.xlane.xlu0 %477
  %v479 = vsel %vm136, %v122, 0.0
  %480 = vadd.xlane.f32.xlu0 %v479
  %v481 = vpop.xlane.xlu0 %480
  %v482 = vsel %vm136, %v123, 0.0
  %483 = vadd.xlane.f32.xlu0 %v482
  %v484 = vpop.xlane.xlu0 %483
  %v485 = vsel %vm136, %v124, 0.0
  %486 = vadd.xlane.f32.xlu0 %v485
  %v487 = vpop.xlane.xlu0 %486
  %v488 = vsel %vm136, %v125, 0.0
  %489 = vadd.xlane.f32.xlu0 %v488
  %v490 = vpop.xlane.xlu0 %489
  %v491 = vsel %vm136, %v126, 0.0
  %492 = vadd.xlane.f32.xlu0 %v491
  %v493 = vpop.xlane.xlu0 %492
  %v494 = vsel %vm136, %v127, 0.0
  %495 = vadd.xlane.f32.xlu0 %v494
  %v496 = vpop.xlane.xlu0 %495
  %v497 = vsel %vm136, %v128, 0.0
  %498 = vadd.xlane.f32.xlu0 %v497
  %v499 = vpop.xlane.xlu0 %498
  %v500 = vsel %vm136, %v129, 0.0
  %501 = vadd.xlane.f32.xlu0 %v500
  %v502 = vpop.xlane.xlu0 %501
  %v503 = vsel %vm136, %v130, 0.0
  %504 = vadd.xlane.f32.xlu0 %v503
  %v505 = vpop.xlane.xlu0 %504
  %v506 = vsel %vm136, %v131, 0.0
  %507 = vadd.xlane.f32.xlu0 %v506
  %v508 = vpop.xlane.xlu0 %507
  %v509 = vsel %vm136, %v132, 0.0
  %510 = vadd.xlane.f32.xlu0 %v509
  %v511 = vpop.xlane.xlu0 %510
  %v512 = vsel %vm136, %v133, 0.0
  %513 = vadd.xlane.f32.xlu0 %v512
  %v514 = vpop.xlane.xlu0 %513
  %v515 = vsel %vm136, %v134, 0.0
  %516 = vadd.xlane.f32.xlu0 %v515
  %v517 = vpop.xlane.xlu0 %516
  %v518 = vsel %vm136, %v135, 0.0
  %519 = vadd.xlane.f32.xlu0 %v518
  %v520 = vpop.xlane.xlu0 %519
  %vm521 = vcmask 7168
  %522 = vst.msk [vmem:[%s1] sm:$0xff] %vm521, %v139
  %523 = vst.msk [vmem:[%s1 + $0x8] sm:$0xff] %vm521, %v142
  %524 = vst.msk [vmem:[%s1 + $0x10] sm:$0xff] %vm521, %v145
  %525 = vst.msk [vmem:[%s1 + $0x18] sm:$0xff] %vm521, %v148
  %526 = vst.msk [vmem:[%s1 + $0x20] sm:$0xff] %vm521, %v151
  %527 = vst.msk [vmem:[%s1 + $0x28] sm:$0xff] %vm521, %v154
  %528 = vst.msk [vmem:[%s1 + $0x30] sm:$0xff] %vm521, %v157
  %529 = vst.msk [vmem:[%s1 + $0x38] sm:$0xff] %vm521, %v160
  %530 = vst.msk [vmem:[%s1 + $0x40] sm:$0xff] %vm521, %v163
  %531 = vst.msk [vmem:[%s1 + $0x48] sm:$0xff] %vm521, %v166
  %532 = vst.msk [vmem:[%s1 + $0x50] sm:$0xff] %vm521, %v169
  %533 = vst.msk [vmem:[%s1 + $0x58] sm:$0xff] %vm521, %v172
  %534 = vst.msk [vmem:[%s1 + $0x60] sm:$0xff] %vm521, %v175
  %535 = vst.msk [vmem:[%s1 + $0x68] sm:$0xff] %vm521, %v178
  %536 = vst.msk [vmem:[%s1 + $0x70] sm:$0xff] %vm521, %v181
  %537 = vst.msk [vmem:[%s1 + $0x78] sm:$0xff] %vm521, %v184
  %538 = vst.msk [vmem:[%s1 + $0x80] sm:$0xff] %vm521, %v187
  %539 = vst.msk [vmem:[%s1 + $0x88] sm:$0xff] %vm521, %v190
  %540 = vst.msk [vmem:[%s1 + $0x90] sm:$0xff] %vm521, %v193
  %541 = vst.msk [vmem:[%s1 + $0x98] sm:$0xff] %vm521, %v196
  %542 = vst.msk [vmem:[%s1 + $0xa0] sm:$0xff] %vm521, %v199
  %543 = vst.msk [vmem:[%s1 + $0xa8] sm:$0xff] %vm521, %v202
  %544 = vst.msk [vmem:[%s1 + $0xb0] sm:$0xff] %vm521, %v205
  %545 = vst.msk [vmem:[%s1 + $0xb8] sm:$0xff] %vm521, %v208
  %546 = vst.msk [vmem:[%s1 + $0xc0] sm:$0xff] %vm521, %v211
  %547 = vst.msk [vmem:[%s1 + $0xc8] sm:$0xff] %vm521, %v214
  %548 = vst.msk [vmem:[%s1 + $0xd0] sm:$0xff] %vm521, %v217
  %549 = vst.msk [vmem:[%s1 + $0xd8] sm:$0xff] %vm521, %v220
  %550 = vst.msk [vmem:[%s1 + $0xe0] sm:$0xff] %vm521, %v223
  %551 = vst.msk [vmem:[%s1 + $0xe8] sm:$0xff] %vm521, %v226
  %552 = vst.msk [vmem:[%s1 + $0xf0] sm:$0xff] %vm521, %v229
  %553 = vst.msk [vmem:[%s1 + $0xf8] sm:$0xff] %vm521, %v232
  %554 = vst.msk [vmem:[%s1 + $0x100] sm:$0xff] %vm521, %v235
  %555 = vst.msk [vmem:[%s1 + $0x108] sm:$0xff] %vm521, %v238
  %556 = vst.msk [vmem:[%s1 + $0x110] sm:$0xff] %vm521, %v241
  %557 = vst.msk [vmem:[%s1 + $0x118] sm:$0xff] %vm521, %v244
  %558 = vst.msk [vmem:[%s1 + $0x120] sm:$0xff] %vm521, %v247
  %559 = vst.msk [vmem:[%s1 + $0x128] sm:$0xff] %vm521, %v250
  %560 = vst.msk [vmem:[%s1 + $0x130] sm:$0xff] %vm521, %v253
  %561 = vst.msk [vmem:[%s1 + $0x138] sm:$0xff] %vm521, %v256
  %562 = vst.msk [vmem:[%s1 + $0x140] sm:$0xff] %vm521, %v259
  %563 = vst.msk [vmem:[%s1 + $0x148] sm:$0xff] %vm521, %v262
  %564 = vst.msk [vmem:[%s1 + $0x150] sm:$0xff] %vm521, %v265
  %565 = vst.msk [vmem:[%s1 + $0x158] sm:$0xff] %vm521, %v268
  %566 = vst.msk [vmem:[%s1 + $0x160] sm:$0xff] %vm521, %v271
  %567 = vst.msk [vmem:[%s1 + $0x168] sm:$0xff] %vm521, %v274
  %568 = vst.msk [vmem:[%s1 + $0x170] sm:$0xff] %vm521, %v277
  %569 = vst.msk [vmem:[%s1 + $0x178] sm:$0xff] %vm521, %v280
  %570 = vst.msk [vmem:[%s1 + $0x180] sm:$0xff] %vm521, %v283
  %571 = vst.msk [vmem:[%s1 + $0x188] sm:$0xff] %vm521, %v286
  %572 = vst.msk [vmem:[%s1 + $0x190] sm:$0xff] %vm521, %v289
  %573 = vst.msk [vmem:[%s1 + $0x198] sm:$0xff] %vm521, %v292
  %574 = vst.msk [vmem:[%s1 + $0x1a0] sm:$0xff] %vm521, %v295
  %575 = vst.msk [vmem:[%s1 + $0x1a8] sm:$0xff] %vm521, %v298
  %576 = vst.msk [vmem:[%s1 + $0x1b0] sm:$0xff] %vm521, %v301
  %577 = vst.msk [vmem:[%s1 + $0x1b8] sm:$0xff] %vm521, %v304
  %578 = vst.msk [vmem:[%s1 + $0x1c0] sm:$0xff] %vm521, %v307
  %579 = vst.msk [vmem:[%s1 + $0x1c8] sm:$0xff] %vm521, %v310
  %580 = vst.msk [vmem:[%s1 + $0x1d0] sm:$0xff] %vm521, %v313
  %581 = vst.msk [vmem:[%s1 + $0x1d8] sm:$0xff] %vm521, %v316
  %582 = vst.msk [vmem:[%s1 + $0x1e0] sm:$0xff] %vm521, %v319
  %583 = vst.msk [vmem:[%s1 + $0x1e8] sm:$0xff] %vm521, %v322
  %584 = vst.msk [vmem:[%s1 + $0x1f0] sm:$0xff] %vm521, %v325
  %585 = vst.msk [vmem:[%s1 + $0x1f8] sm:$0xff] %vm521, %v328
  %586 = vst.msk [vmem:[%s1 + $0x200] sm:$0xff] %vm521, %v331
  %587 = vst.msk [vmem:[%s1 + $0x208] sm:$0xff] %vm521, %v334
  %588 = vst.msk [vmem:[%s1 + $0x210] sm:$0xff] %vm521, %v337
  %589 = vst.msk [vmem:[%s1 + $0x218] sm:$0xff] %vm521, %v340
  %590 = vst.msk [vmem:[%s1 + $0x220] sm:$0xff] %vm521, %v343
  %591 = vst.msk [vmem:[%s1 + $0x228] sm:$0xff] %vm521, %v346
  %592 = vst.msk [vmem:[%s1 + $0x230] sm:$0xff] %vm521, %v349
  %593 = vst.msk [vmem:[%s1 + $0x238] sm:$0xff] %vm521, %v352
  %594 = vst.msk [vmem:[%s1 + $0x240] sm:$0xff] %vm521, %v355
  %595 = vst.msk [vmem:[%s1 + $0x248] sm:$0xff] %vm521, %v358
  %596 = vst.msk [vmem:[%s1 + $0x250] sm:$0xff] %vm521, %v361
  %597 = vst.msk [vmem:[%s1 + $0x258] sm:$0xff] %vm521, %v364
  %598 = vst.msk [vmem:[%s1 + $0x260] sm:$0xff] %vm521, %v367
  %599 = vst.msk [vmem:[%s1 + $0x268] sm:$0xff] %vm521, %v370
  %600 = vst.msk [vmem:[%s1 + $0x270] sm:$0xff] %vm521, %v373
  %601 = vst.msk [vmem:[%s1 + $0x278] sm:$0xff] %vm521, %v376
  %602 = vst.msk [vmem:[%s1 + $0x280] sm:$0xff] %vm521, %v379
  %603 = vst.msk [vmem:[%s1 + $0x288] sm:$0xff] %vm521, %v382
  %604 = vst.msk [vmem:[%s1 + $0x290] sm:$0xff] %vm521, %v385
  %605 = vst.msk [vmem:[%s1 + $0x298] sm:$0xff] %vm521, %v388
  %606 = vst.msk [vmem:[%s1 + $0x2a0] sm:$0xff] %vm521, %v391
  %607 = vst.msk [vmem:[%s1 + $0x2a8] sm:$0xff] %vm521, %v394
  %608 = vst.msk [vmem:[%s1 + $0x2b0] sm:$0xff] %vm521, %v397
  %609 = vst.msk [vmem:[%s1 + $0x2b8] sm:$0xff] %vm521, %v400
  %610 = vst.msk [vmem:[%s1 + $0x2c0] sm:$0xff] %vm521, %v403
  %611 = vst.msk [vmem:[%s1 + $0x2c8] sm:$0xff] %vm521, %v406
  %612 = vst.msk [vmem:[%s1 + $0x2d0] sm:$0xff] %vm521, %v409
  %613 = vst.msk [vmem:[%s1 + $0x2d8] sm:$0xff] %vm521, %v412
  %614 = vst.msk [vmem:[%s1 + $0x2e0] sm:$0xff] %vm521, %v415
  %615 = vst.msk [vmem:[%s1 + $0x2e8] sm:$0xff] %vm521, %v418
  %616 = vst.msk [vmem:[%s1 + $0x2f0] sm:$0xff] %vm521, %v421
  %617 = vst.msk [vmem:[%s1 + $0x2f8] sm:$0xff] %vm521, %v424
  %618 = vst.msk [vmem:[%s1 + $0x300] sm:$0xff] %vm521, %v427
  %619 = vst.msk [vmem:[%s1 + $0x308] sm:$0xff] %vm521, %v430
  %620 = vst.msk [vmem:[%s1 + $0x310] sm:$0xff] %vm521, %v433
  %621 = vst.msk [vmem:[%s1 + $0x318] sm:$0xff] %vm521, %v436
  %622 = vst.msk [vmem:[%s1 + $0x320] sm:$0xff] %vm521, %v439
  %623 = vst.msk [vmem:[%s1 + $0x328] sm:$0xff] %vm521, %v442
  %624 = vst.msk [vmem:[%s1 + $0x330] sm:$0xff] %vm521, %v445
  %625 = vst.msk [vmem:[%s1 + $0x338] sm:$0xff] %vm521, %v448
  %626 = vst.msk [vmem:[%s1 + $0x340] sm:$0xff] %vm521, %v451
  %627 = vst.msk [vmem:[%s1 + $0x348] sm:$0xff] %vm521, %v454
  %628 = vst.msk [vmem:[%s1 + $0x350] sm:$0xff] %vm521, %v457
  %629 = vst.msk [vmem:[%s1 + $0x358] sm:$0xff] %vm521, %v460
  %630 = vst.msk [vmem:[%s1 + $0x360] sm:$0xff] %vm521, %v463
  %631 = vst.msk [vmem:[%s1 + $0x368] sm:$0xff] %vm521, %v466
  %632 = vst.msk [vmem:[%s1 + $0x370] sm:$0xff] %vm521, %v469
  %633 = vst.msk [vmem:[%s1 + $0x378] sm:$0xff] %vm521, %v472
  %634 = vst.msk [vmem:[%s1 + $0x380] sm:$0xff] %vm521, %v475
  %635 = vst.msk [vmem:[%s1 + $0x388] sm:$0xff] %vm521, %v478
  %636 = vst.msk [vmem:[%s1 + $0x390] sm:$0xff] %vm521, %v481
  %637 = vst.msk [vmem:[%s1 + $0x398] sm:$0xff] %vm521, %v484
  %638 = vst.msk [vmem:[%s1 + $0x3a0] sm:$0xff] %vm521, %v487
  %639 = vst.msk [vmem:[%s1 + $0x3a8] sm:$0xff] %vm521, %v490
  %640 = vst.msk [vmem:[%s1 + $0x3b0] sm:$0xff] %vm521, %v493
  %641 = vst.msk [vmem:[%s1 + $0x3b8] sm:$0xff] %vm521, %v496
  %642 = vst.msk [vmem:[%s1 + $0x3c0] sm:$0xff] %vm521, %v499
  %643 = vst.msk [vmem:[%s1 + $0x3c8] sm:$0xff] %vm521, %v502
  %644 = vst.msk [vmem:[%s1 + $0x3d0] sm:$0xff] %vm521, %v505
  %645 = vst.msk [vmem:[%s1 + $0x3d8] sm:$0xff] %vm521, %v508
  %646 = vst.msk [vmem:[%s1 + $0x3e0] sm:$0xff] %vm521, %v511
  %647 = vst.msk [vmem:[%s1 + $0x3e8] sm:$0xff] %vm521, %v514
  %648 = vst.msk [vmem:[%s1 + $0x3f0] sm:$0xff] %vm521, %v517
  %649 = vst.msk [vmem:[%s1 + $0x3f8] sm:$0xff] %vm521, %v520
  // Predicated region
  $region6: #{tpu_custom_call.1} parent=0 // pred_check
    _
  $region7: #{tpu_custom_call.1} parent=0 // pred_check_branch
    %651 = sbr.rel (0) target = $region9
  $region8: #{tpu_custom_call.1} parent=0 // pred_region
    _
  $region9: #{tpu_custom_call.1} parent=0 // pred_fallthru
    _
  // Predicated region
  $region10: #{tpu_custom_call.1} parent=0 // pred_check
    _
  $region11: #{tpu_custom_call.1} parent=0 // pred_check_branch
    %653 = sbr.rel (0) target = $region13
  $region12: #{tpu_custom_call.1} parent=0 // pred_region
    _
  $region13: #{tpu_custom_call.1} parent=0 // pred_fallthru
    _

</llo_original>
